<compile_context>
chip_gen: v5e
topology: v5e:2x2
jax: 0.10.0
libtpu: 0.0.40
codegen_flags: <defaults>
</compile_context>

<pallas_src>
import jax
import jax.numpy as jnp
from jax.experimental import pallas as pl
from jax.experimental.pallas import tpu as pltpu


def _round_up(x, m):
    return ((x + m - 1) // m) * m


# ----------------------------- kernel ---------------------------------------


def _make_mlp_kernel(num_mlp_blocks, num_block_layers, use_skip_connection):
    """Builds a Pallas kernel whose structure matches the module config."""

    def kernel(x_ref, w_ref, b_ref, *rest):
        if use_skip_connection:
            sw_ref, sb_ref, out_ref = rest
        else:
            (out_ref,) = rest

        def dense(w, h, b):
            # W: (D, K), h: (K, TILE_B), b: (D, 1) -> (D, TILE_B), lane-dense.
            return jnp.dot(w, h, preferred_element_type=jnp.float32) + b

        li = 0
        # h1 (input normalization pre-folded into W/b) + relu
        x = jnp.maximum(dense(w_ref[li], x_ref[...], b_ref[li]), 0.0)
        li += 1

        # ResNet blocks (relu applied after each block, as in forward())
        for blk in range(num_mlp_blocks):
            residual = x
            for _ in range(num_block_layers):
                x = jnp.maximum(dense(w_ref[li], x, b_ref[li]), 0.0)
                li += 1
            if use_skip_connection:
                # Fused block-output + skip projection: one matmul over [x; res].
                cat = jnp.concatenate([x, residual], axis=0)
                x = jnp.maximum(dense(sw_ref[blk], cat, sb_ref[blk]), 0.0)
            else:
                x = jnp.maximum(dense(w_ref[li], x, b_ref[li]), 0.0)
                li += 1

        # h2 + sigmoid
        out_ref[...] = jax.nn.sigmoid(dense(w_ref[li], x, b_ref[li]))

    return kernel


# --------------------------- parameter packing --------------------------------


def pack_params(bounds, flat_params, config):
    """Transpose, pad and stack per-layer params into a few dense buffers."""
    in_dim = config["num_cosmo_params"] + config["num_bias_params"]
    dims = list(config["mlp_dims"])
    output_dim = config["output_kbins"] * 2
    d_pad = _round_up(max([in_dim, output_dim] + dims), 8)

    idx = [0]

    def take():
        w, b = flat_params[idx[0]], flat_params[idx[0] + 1]
        idx[0] += 2
        return w, b

    def pad_wt(wt):  # wt: (out, in) -> (d_pad, d_pad)
        out_d, in_d = wt.shape
        return jnp.zeros((d_pad, d_pad), jnp.float32).at[:out_d, :in_d].set(wt)

    def pad_bcol(bvec):  # (out,) -> (d_pad, 1)
        return jnp.zeros((d_pad, 1), jnp.float32).at[: bvec.shape[0], 0].set(bvec)

    main_w, main_b, skip_w, skip_b = [], [], [], []

    # h1 with normalization folded in:
    #   W1 @ ((x - lo) * inv) + b1 == (W1*inv) @ x + (b1 - (W1*inv) @ lo)
    w, b = take()
    lo, hi = bounds[0], bounds[1]
    inv = 1.0 / (hi - lo)
    wt = w.T * inv[None, :]          # (dims[0], in_dim)
    bf = b[0] - wt @ lo              # (dims[0],)
    main_w.append(pad_wt(wt))
    main_b.append(pad_bcol(bf))

    for _ in range(config["num_mlp_blocks"]):
        for _ in range(config["num_block_layers"]):
            w, b = take()
            main_w.append(pad_wt(w.T))
            main_b.append(pad_bcol(b[0]))
        w_out, b_out = take()
        if config["use_skip_connection"]:
            w_sk, b_sk = take()
            skip_w.append(jnp.concatenate([pad_wt(w_out.T), pad_wt(w_sk.T)], axis=1))
            skip_b.append(pad_bcol(b_out[0]) + pad_bcol(b_sk[0]))
        else:
            main_w.append(pad_wt(w_out.T))
            main_b.append(pad_bcol(b_out[0]))

    # h2
    w, b = take()
    main_w.append(pad_wt(w.T))
    main_b.append(pad_bcol(b[0]))

    w_stack = jnp.stack(main_w)                      # (L, d_pad, d_pad)
    b_stack = jnp.stack(main_b)                      # (L, d_pad, 1)
    sw = jnp.stack(skip_w) if skip_w else None       # (nblk, d_pad, 2*d_pad)
    sb = jnp.stack(skip_b) if skip_b else None       # (nblk, d_pad, 1)
    return d_pad, w_stack, b_stack, sw, sb


# ----------------------------- wrapper ---------------------------------------


def mlp_forward_pallas(x, bounds, flat_params, config, tile_b=512):
    """Whole MLP forward in one Pallas kernel, tiled over the batch dimension."""
    batch, in_dim = x.shape
    output_dim = config["output_kbins"] * 2

    d_pad, w_stack, b_stack, sw, sb = pack_params(bounds, flat_params, config)

    tile_b = min(tile_b, _round_up(batch, 128))
    pb = _round_up(batch, tile_b)

    # Lane-dense layout: features on sublanes, batch on lanes (pad with zeros).
    x_t = jnp.zeros((d_pad, pb), jnp.float32).at[:in_dim, :batch].set(x.T)

    kernel = _make_mlp_kernel(
        config["num_mlp_blocks"],
        config["num_block_layers"],
        config["use_skip_connection"],
    )

    const3 = lambda i: (0, 0, 0)  # weights resident across all grid steps
    in_specs = [
        pl.BlockSpec((d_pad, tile_b), lambda i: (0, i)),
        pl.BlockSpec(tuple(w_stack.shape), const3),
        pl.BlockSpec(tuple(b_stack.shape), const3),
    ]
    args = [x_t, w_stack, b_stack]
    if config["use_skip_connection"]:
        in_specs += [
            pl.BlockSpec(tuple(sw.shape), const3),
            pl.BlockSpec(tuple(sb.shape), const3),
        ]
        args += [sw, sb]

    out_t = pl.pallas_call(
        kernel,
        out_shape=jax.ShapeDtypeStruct((d_pad, pb), jnp.float32),
        grid=(pb // tile_b,),
        in_specs=in_specs,
        out_specs=pl.BlockSpec((d_pad, tile_b), lambda i: (0, i)),
        compiler_params=pltpu.CompilerParams(
            dimension_semantics=("parallel",)),
    )(*args)

    # Back to module convention (batch, output_dim); drop padding.
    return out_t[:output_dim, :batch].T


# --------------------------- parameter setup ---------------------------------


def init_params(key, config):
    """Deterministic synthetic parameters; returns (bounds_2xin, flat list of W/b)."""
    in_dim = config["num_cosmo_params"] + config["num_bias_params"]
    dims = config["mlp_dims"]
    output_dim = config["output_kbins"] * 2

    def linear(key, d_in, d_out):
        kw, kb = jax.random.split(key)
        scale = 1.0 / jnp.sqrt(jnp.float32(d_in))
        w = jax.random.uniform(kw, (d_in, d_out), jnp.float32, -scale, scale)
        b = jax.random.uniform(kb, (1, d_out), jnp.float32, -scale, scale)
        return w, b

    keys = iter(jax.random.split(key, 256))

    # bounds: lower in row 0, upper in row 1, strictly ordered.
    lo = jax.random.uniform(next(keys), (1, in_dim), jnp.float32, -2.0, 0.0)
    width = jax.random.uniform(next(keys), (1, in_dim), jnp.float32, 0.5, 2.0)
    bounds = jnp.concatenate([lo, lo + width], axis=0)  # (2, in_dim)

    flat = []
    # h1
    flat += list(linear(next(keys), in_dim, dims[0]))
    # resnet blocks
    for i in range(config["num_mlp_blocks"]):
        d_in, d_out = dims[i], dims[i + 1]
        for _ in range(config["num_block_layers"]):
            flat += list(linear(next(keys), d_in, d_in))
        flat += list(linear(next(keys), d_in, d_out))
        if config["use_skip_connection"]:
            flat += list(linear(next(keys), d_in, d_out))
    # h2
    flat += list(linear(next(keys), dims[-1], output_dim))
    return bounds, flat


# --------------------------- pure-JAX reference -------------------------------


def mlp_forward_ref(x, bounds, flat_params, config):
    idx = [0]

    def take():
        w, b = flat_params[idx[0]], flat_params[idx[0] + 1]
        idx[0] += 2
        return w, b

    x = (x - bounds[0:1, :]) / (bounds[1:2, :] - bounds[0:1, :])
    w, b = take()
    x = jax.nn.relu(x @ w + b)
    for _ in range(config["num_mlp_blocks"]):
        residual = x
        for _ in range(config["num_block_layers"]):
            w, b = take()
            x = jax.nn.relu(x @ w + b)
        w, b = take()
        x = x @ w + b
        if config["use_skip_connection"]:
            w, b = take()
            x = x + residual @ w + b
        x = jax.nn.relu(x)
    w, b = take()
    return jax.nn.sigmoid(x @ w + b)


# ------------------------------- main -----------------------------------------


if __name__ == "__main__":
    config = {
        "num_cosmo_params": 4,
        "num_bias_params": 4,
        "mlp_dims": [32, 32, 32],
        "num_mlp_blocks": 2,
        "num_block_layers": 2,
        "use_skip_connection": True,
        "output_kbins": 16,  # output_dim = 32
    }

    key = jax.random.PRNGKey(0)
    k_params, k_x = jax.random.split(key)

    bounds, flat_params = init_params(k_params, config)

    batch = 8
    in_dim = config["num_cosmo_params"] + config["num_bias_params"]
    # sample inputs uniformly inside the parameter bounds
    u = jax.random.uniform(k_x, (batch, in_dim), jnp.float32)
    x = bounds[0:1, :] + u * (bounds[1:2, :] - bounds[0:1, :])

    out = mlp_forward_pallas(x, bounds, flat_params, config)
    out = jax.block_until_ready(out)

    with jax.default_matmul_precision("highest"):
        ref = mlp_forward_ref(x, bounds, flat_params, config)

    assert out.shape == (batch, config["output_kbins"] * 2)
    assert jnp.allclose(out, ref, atol=1e-4, rtol=1e-4), "mismatch vs JAX reference"

    print("KERNEL_OK")
</pallas_src>

<mosaic_0001>
module attributes {stable_mosaic.version = 11 : i64} {
  func.func @kernel(%arg0: i32, %arg1: memref<32x128xf32, #tpu.memory_space<vmem>>, %arg2: memref<6x32x32xf32, #tpu.memory_space<vmem>>, %arg3: memref<6x32x1xf32, #tpu.memory_space<vmem>>, %arg4: memref<2x32x64xf32, #tpu.memory_space<vmem>>, %arg5: memref<2x32x1xf32, #tpu.memory_space<vmem>>, %arg6: memref<32x128xf32, #tpu.memory_space<vmem>>) attributes {dimension_semantics = [#tpu.dimension_semantics<parallel>], iteration_bounds = array<i64: 1>, scalar_prefetch = 0 : i64, scratch_operands = 0 : i64, tpu.core_type = #tpu.core_type<tc>, window_params = [{transform_indices = @transform_0, window_bounds = array<i64: 32, 128>}, {pipeline_mode = #tpu.pipeline_mode<synchronous>, transform_indices = @transform_1, window_bounds = array<i64: 6, 32, 32>}, {pipeline_mode = #tpu.pipeline_mode<synchronous>, transform_indices = @transform_2, window_bounds = array<i64: 6, 32, 1>}, {pipeline_mode = #tpu.pipeline_mode<synchronous>, transform_indices = @transform_3, window_bounds = array<i64: 2, 32, 64>}, {pipeline_mode = #tpu.pipeline_mode<synchronous>, transform_indices = @transform_4, window_bounds = array<i64: 2, 32, 1>}, {transform_indices = @transform_5, window_bounds = array<i64: 32, 128>}]} {
    %c0 = arith.constant 0 : index
    %c0_0 = arith.constant 0 : index
    %c0_1 = arith.constant 0 : index
    %0 = vector.load %arg2[%c0, %c0_0, %c0_1] : memref<6x32x32xf32, #tpu.memory_space<vmem>>, vector<1x32x32xf32>
    %1 = vector.shape_cast %0 : vector<1x32x32xf32> to vector<32x32xf32>
    %c0_2 = arith.constant 0 : index
    %c0_3 = arith.constant 0 : index
    %2 = vector.load %arg1[%c0_2, %c0_3] : memref<32x128xf32, #tpu.memory_space<vmem>>, vector<32x128xf32>
    %c0_4 = arith.constant 0 : index
    %c0_5 = arith.constant 0 : index
    %c0_6 = arith.constant 0 : index
    %3 = vector.load %arg3[%c0_4, %c0_5, %c0_6] : memref<6x32x1xf32, #tpu.memory_space<vmem>>, vector<1x32x1xf32>
    %4 = vector.shape_cast %3 : vector<1x32x1xf32> to vector<32x1xf32>
    %cst = arith.constant dense<0.000000e+00> : vector<32x128xf32>
    %5 = tpu.matmul %1, %2, %cst {dimension_numbers = #tpu.dot_dimension_numbers<[1], [0], [0], [1], [0, 0, 1, 1], [], []>} : vector<32x32xf32>, vector<32x128xf32>, vector<32x128xf32> -> vector<32x128xf32>
    %6 = vector.broadcast %4 : vector<32x1xf32> to vector<32x128xf32>
    %7 = arith.addf %5, %6 : vector<32x128xf32>
    %cst_7 = arith.constant 0.000000e+00 : f32
    %8 = vector.broadcast %cst_7 : f32 to vector<32x128xf32>
    %9 = arith.maximumf %7, %8 : vector<32x128xf32>
    %c1 = arith.constant 1 : index
    %c0_8 = arith.constant 0 : index
    %c0_9 = arith.constant 0 : index
    %10 = vector.load %arg2[%c1, %c0_8, %c0_9] : memref<6x32x32xf32, #tpu.memory_space<vmem>>, vector<1x32x32xf32>
    %11 = vector.shape_cast %10 : vector<1x32x32xf32> to vector<32x32xf32>
    %c1_10 = arith.constant 1 : index
    %c0_11 = arith.constant 0 : index
    %c0_12 = arith.constant 0 : index
    %12 = vector.load %arg3[%c1_10, %c0_11, %c0_12] : memref<6x32x1xf32, #tpu.memory_space<vmem>>, vector<1x32x1xf32>
    %13 = vector.shape_cast %12 : vector<1x32x1xf32> to vector<32x1xf32>
    %cst_13 = arith.constant dense<0.000000e+00> : vector<32x128xf32>
    %14 = tpu.matmul %11, %9, %cst_13 {dimension_numbers = #tpu.dot_dimension_numbers<[1], [0], [0], [1], [0, 0, 1, 1], [], []>} : vector<32x32xf32>, vector<32x128xf32>, vector<32x128xf32> -> vector<32x128xf32>
    %15 = vector.broadcast %13 : vector<32x1xf32> to vector<32x128xf32>
    %16 = arith.addf %14, %15 : vector<32x128xf32>
    %cst_14 = arith.constant 0.000000e+00 : f32
    %17 = vector.broadcast %cst_14 : f32 to vector<32x128xf32>
    %18 = arith.maximumf %16, %17 : vector<32x128xf32>
    %c2 = arith.constant 2 : index
    %c0_15 = arith.constant 0 : index
    %c0_16 = arith.constant 0 : index
    %19 = vector.load %arg2[%c2, %c0_15, %c0_16] : memref<6x32x32xf32, #tpu.memory_space<vmem>>, vector<1x32x32xf32>
    %20 = vector.shape_cast %19 : vector<1x32x32xf32> to vector<32x32xf32>
    %c2_17 = arith.constant 2 : index
    %c0_18 = arith.constant 0 : index
    %c0_19 = arith.constant 0 : index
    %21 = vector.load %arg3[%c2_17, %c0_18, %c0_19] : memref<6x32x1xf32, #tpu.memory_space<vmem>>, vector<1x32x1xf32>
    %22 = vector.shape_cast %21 : vector<1x32x1xf32> to vector<32x1xf32>
    %cst_20 = arith.constant dense<0.000000e+00> : vector<32x128xf32>
    %23 = tpu.matmul %20, %18, %cst_20 {dimension_numbers = #tpu.dot_dimension_numbers<[1], [0], [0], [1], [0, 0, 1, 1], [], []>} : vector<32x32xf32>, vector<32x128xf32>, vector<32x128xf32> -> vector<32x128xf32>
    %24 = vector.broadcast %22 : vector<32x1xf32> to vector<32x128xf32>
    %25 = arith.addf %23, %24 : vector<32x128xf32>
    %cst_21 = arith.constant 0.000000e+00 : f32
    %26 = vector.broadcast %cst_21 : f32 to vector<32x128xf32>
    %27 = arith.maximumf %25, %26 : vector<32x128xf32>
    %28 = tpu.concatenate %27, %9 in 0 : vector<32x128xf32>, vector<32x128xf32> -> vector<64x128xf32>
    %c0_22 = arith.constant 0 : index
    %c0_23 = arith.constant 0 : index
    %c0_24 = arith.constant 0 : index
    %29 = vector.load %arg4[%c0_22, %c0_23, %c0_24] : memref<2x32x64xf32, #tpu.memory_space<vmem>>, vector<1x32x64xf32>
    %30 = vector.shape_cast %29 : vector<1x32x64xf32> to vector<32x64xf32>
    %c0_25 = arith.constant 0 : index
    %c0_26 = arith.constant 0 : index
    %c0_27 = arith.constant 0 : index
    %31 = vector.load %arg5[%c0_25, %c0_26, %c0_27] : memref<2x32x1xf32, #tpu.memory_space<vmem>>, vector<1x32x1xf32>
    %32 = vector.shape_cast %31 : vector<1x32x1xf32> to vector<32x1xf32>
    %cst_28 = arith.constant dense<0.000000e+00> : vector<32x128xf32>
    %33 = tpu.matmul %30, %28, %cst_28 {dimension_numbers = #tpu.dot_dimension_numbers<[1], [0], [0], [1], [0, 0, 1, 1], [], []>} : vector<32x64xf32>, vector<64x128xf32>, vector<32x128xf32> -> vector<32x128xf32>
    %34 = vector.broadcast %32 : vector<32x1xf32> to vector<32x128xf32>
    %35 = arith.addf %33, %34 : vector<32x128xf32>
    %cst_29 = arith.constant 0.000000e+00 : f32
    %36 = vector.broadcast %cst_29 : f32 to vector<32x128xf32>
    %37 = arith.maximumf %35, %36 : vector<32x128xf32>
    %c3 = arith.constant 3 : index
    %c0_30 = arith.constant 0 : index
    %c0_31 = arith.constant 0 : index
    %38 = vector.load %arg2[%c3, %c0_30, %c0_31] : memref<6x32x32xf32, #tpu.memory_space<vmem>>, vector<1x32x32xf32>
    %39 = vector.shape_cast %38 : vector<1x32x32xf32> to vector<32x32xf32>
    %c3_32 = arith.constant 3 : index
    %c0_33 = arith.constant 0 : index
    %c0_34 = arith.constant 0 : index
    %40 = vector.load %arg3[%c3_32, %c0_33, %c0_34] : memref<6x32x1xf32, #tpu.memory_space<vmem>>, vector<1x32x1xf32>
    %41 = vector.shape_cast %40 : vector<1x32x1xf32> to vector<32x1xf32>
    %cst_35 = arith.constant dense<0.000000e+00> : vector<32x128xf32>
    %42 = tpu.matmul %39, %37, %cst_35 {dimension_numbers = #tpu.dot_dimension_numbers<[1], [0], [0], [1], [0, 0, 1, 1], [], []>} : vector<32x32xf32>, vector<32x128xf32>, vector<32x128xf32> -> vector<32x128xf32>
    %43 = vector.broadcast %41 : vector<32x1xf32> to vector<32x128xf32>
    %44 = arith.addf %42, %43 : vector<32x128xf32>
    %cst_36 = arith.constant 0.000000e+00 : f32
    %45 = vector.broadcast %cst_36 : f32 to vector<32x128xf32>
    %46 = arith.maximumf %44, %45 : vector<32x128xf32>
    %c4 = arith.constant 4 : index
    %c0_37 = arith.constant 0 : index
    %c0_38 = arith.constant 0 : index
    %47 = vector.load %arg2[%c4, %c0_37, %c0_38] : memref<6x32x32xf32, #tpu.memory_space<vmem>>, vector<1x32x32xf32>
    %48 = vector.shape_cast %47 : vector<1x32x32xf32> to vector<32x32xf32>
    %c4_39 = arith.constant 4 : index
    %c0_40 = arith.constant 0 : index
    %c0_41 = arith.constant 0 : index
    %49 = vector.load %arg3[%c4_39, %c0_40, %c0_41] : memref<6x32x1xf32, #tpu.memory_space<vmem>>, vector<1x32x1xf32>
    %50 = vector.shape_cast %49 : vector<1x32x1xf32> to vector<32x1xf32>
    %cst_42 = arith.constant dense<0.000000e+00> : vector<32x128xf32>
    %51 = tpu.matmul %48, %46, %cst_42 {dimension_numbers = #tpu.dot_dimension_numbers<[1], [0], [0], [1], [0, 0, 1, 1], [], []>} : vector<32x32xf32>, vector<32x128xf32>, vector<32x128xf32> -> vector<32x128xf32>
    %52 = vector.broadcast %50 : vector<32x1xf32> to vector<32x128xf32>
    %53 = arith.addf %51, %52 : vector<32x128xf32>
    %cst_43 = arith.constant 0.000000e+00 : f32
    %54 = vector.broadcast %cst_43 : f32 to vector<32x128xf32>
    %55 = arith.maximumf %53, %54 : vector<32x128xf32>
    %56 = tpu.concatenate %55, %37 in 0 : vector<32x128xf32>, vector<32x128xf32> -> vector<64x128xf32>
    %c1_44 = arith.constant 1 : index
    %c0_45 = arith.constant 0 : index
    %c0_46 = arith.constant 0 : index
    %57 = vector.load %arg4[%c1_44, %c0_45, %c0_46] : memref<2x32x64xf32, #tpu.memory_space<vmem>>, vector<1x32x64xf32>
    %58 = vector.shape_cast %57 : vector<1x32x64xf32> to vector<32x64xf32>
    %c1_47 = arith.constant 1 : index
    %c0_48 = arith.constant 0 : index
    %c0_49 = arith.constant 0 : index
    %59 = vector.load %arg5[%c1_47, %c0_48, %c0_49] : memref<2x32x1xf32, #tpu.memory_space<vmem>>, vector<1x32x1xf32>
    %60 = vector.shape_cast %59 : vector<1x32x1xf32> to vector<32x1xf32>
    %cst_50 = arith.constant dense<0.000000e+00> : vector<32x128xf32>
    %61 = tpu.matmul %58, %56, %cst_50 {dimension_numbers = #tpu.dot_dimension_numbers<[1], [0], [0], [1], [0, 0, 1, 1], [], []>} : vector<32x64xf32>, vector<64x128xf32>, vector<32x128xf32> -> vector<32x128xf32>
    %62 = vector.broadcast %60 : vector<32x1xf32> to vector<32x128xf32>
    %63 = arith.addf %61, %62 : vector<32x128xf32>
    %cst_51 = arith.constant 0.000000e+00 : f32
    %64 = vector.broadcast %cst_51 : f32 to vector<32x128xf32>
    %65 = arith.maximumf %63, %64 : vector<32x128xf32>
    %c5 = arith.constant 5 : index
    %c0_52 = arith.constant 0 : index
    %c0_53 = arith.constant 0 : index
    %66 = vector.load %arg2[%c5, %c0_52, %c0_53] : memref<6x32x32xf32, #tpu.memory_space<vmem>>, vector<1x32x32xf32>
    %67 = vector.shape_cast %66 : vector<1x32x32xf32> to vector<32x32xf32>
    %c5_54 = arith.constant 5 : index
    %c0_55 = arith.constant 0 : index
    %c0_56 = arith.constant 0 : index
    %68 = vector.load %arg3[%c5_54, %c0_55, %c0_56] : memref<6x32x1xf32, #tpu.memory_space<vmem>>, vector<1x32x1xf32>
    %69 = vector.shape_cast %68 : vector<1x32x1xf32> to vector<32x1xf32>
    %cst_57 = arith.constant dense<0.000000e+00> : vector<32x128xf32>
    %70 = tpu.matmul %67, %65, %cst_57 {dimension_numbers = #tpu.dot_dimension_numbers<[1], [0], [0], [1], [0, 0, 1, 1], [], []>} : vector<32x32xf32>, vector<32x128xf32>, vector<32x128xf32> -> vector<32x128xf32>
    %71 = vector.broadcast %69 : vector<32x1xf32> to vector<32x128xf32>
    %72 = arith.addf %70, %71 : vector<32x128xf32>
    %73 = arith.negf %72 : vector<32x128xf32>
    %74 = math.exp %73 : vector<32x128xf32>
    %cst_58 = arith.constant 1.000000e+00 : f32
    %75 = vector.broadcast %cst_58 : f32 to vector<32x128xf32>
    %76 = arith.addf %75, %74 : vector<32x128xf32>
    %77 = arith.divf %75, %76 : vector<32x128xf32>
    %c0_59 = arith.constant 0 : index
    %c0_60 = arith.constant 0 : index
    %78 = vector.load %arg6[%c0_59, %c0_60] : memref<32x128xf32, #tpu.memory_space<vmem>>, vector<32x128xf32>
    tpu.vector_store %arg6[%c0_59, %c0_60], %77 {strides = array<i32>} : memref<32x128xf32, #tpu.memory_space<vmem>>, vector<32x128xf32>,
    return
  }
  func.func @transform_0(%arg0: i32) -> (i32, i32) {
    %c0_i32 = arith.constant 0 : i32
    %c0_i32_0 = arith.constant 0 : i32
    return %c0_i32, %arg0 : i32, i32
  }
  func.func @transform_1(%arg0: i32) -> (i32, i32, i32) {
    %c0_i32 = arith.constant 0 : i32
    %c0_i32_0 = arith.constant 0 : i32
    %c0_i32_1 = arith.constant 0 : i32
    %c0_i32_2 = arith.constant 0 : i32
    return %c0_i32, %c0_i32_0, %c0_i32_1 : i32, i32, i32
  }
  func.func @transform_2(%arg0: i32) -> (i32, i32, i32) {
    %c0_i32 = arith.constant 0 : i32
    %c0_i32_0 = arith.constant 0 : i32
    %c0_i32_1 = arith.constant 0 : i32
    %c0_i32_2 = arith.constant 0 : i32
    return %c0_i32, %c0_i32_0, %c0_i32_1 : i32, i32, i32
  }
  func.func @transform_3(%arg0: i32) -> (i32, i32, i32) {
    %c0_i32 = arith.constant 0 : i32
    %c0_i32_0 = arith.constant 0 : i32
    %c0_i32_1 = arith.constant 0 : i32
    %c0_i32_2 = arith.constant 0 : i32
    return %c0_i32, %c0_i32_0, %c0_i32_1 : i32, i32, i32
  }
  func.func @transform_4(%arg0: i32) -> (i32, i32, i32) {
    %c0_i32 = arith.constant 0 : i32
    %c0_i32_0 = arith.constant 0 : i32
    %c0_i32_1 = arith.constant 0 : i32
    %c0_i32_2 = arith.constant 0 : i32
    return %c0_i32, %c0_i32_0, %c0_i32_1 : i32, i32, i32
  }
  func.func @transform_5(%arg0: i32) -> (i32, i32) {
    %c0_i32 = arith.constant 0 : i32
    %c0_i32_0 = arith.constant 0 : i32
    return %c0_i32, %arg0 : i32, i32
  }
}

</mosaic_0001>

<llo_original>
// kernel: tpu_custom_call.1
$region0: #{tpu_custom_call.1}
  #allocation0 [shape = 'u32[]', space=smem, size = 0x4, offset = 0x4, fixed_abs, tag = 'smem constant byte address 0x4 - core index']
  #allocation1 [shape = 'u32[72,128]{1,0:T(1,128)}', space=vmem, size = 0x9000, scoped, tag = 'internal scratch']
  %s0 = inlined_call_operand.hbm [shape: f32[32,128], index: 0, kind: input, shape index: {}]
  %s1 = inlined_call_operand.vmem [shape: f32[6,32,32], index: 1, kind: input, shape index: {}]
  %s2 = inlined_call_operand.vmem [shape: f32[6,32,1], index: 2, kind: input, shape index: {}]
  %s3 = inlined_call_operand.vmem [shape: f32[2,32,64], index: 3, kind: input, shape index: {}]
  %s4 = inlined_call_operand.vmem [shape: f32[2,32,1], index: 4, kind: input, shape index: {}]
  %s5 = inlined_call_operand.hbm [shape: f32[32,128], index: 5, kind: output, shape index: {}]
  %s6 = sld [smem:[#allocation0]]
  $region34: #{tpu_custom_call.1} parent=0
    _
  %s8 = ssub.s32 1, %s6
  %s9 = scalar_select 0, %s8, %s6
  $region1: #{tpu_custom_call.1} parent=0
    #allocation2 [shape = 'u8[16384]{0}', space=vmem, size = 0x4000, scoped, tag = 'input window, operand 0, single buffered']
    #allocation3 [shape = 's32[1]{0}', space=sflag, size = 0x4, scoped, tag = 'scoped memory for tpu_custom_call.1']
    #allocation4 [shape = 's32[1]{0}', space=sflag, size = 0x4, scoped, tag = 'scoped memory for tpu_custom_call.1']
    #allocation5 [shape = 'u8[16384]{0}', space=vmem, size = 0x4000, scoped, tag = 'output window, operand 0, single buffered']
    %10 = vsyncpa [#allocation3], 0
    %11 = vsyncpa [#allocation4], 0
    // Predicated region
    $region2: #{tpu_custom_call.1} parent=1 // pred_check
      _
    $region3: #{tpu_custom_call.1} parent=1 // pred_check_branch
      %13 = sbr.rel (0) target = $region5
    $region4: #{tpu_custom_call.1} parent=1 // pred_region
      %15 = vsyncadd [#allocation3], 0
      %s16 = sshll.u32 %s0, 4
      %s17 = int_to_ptr.hbm [resolvable:$true] %s16
      %s18 = sshll.u32 [#allocation2], 4
      %s19 = int_to_ptr.vmem [resolvable:$true] %s18
      %24 = dma.hbm_to_vmem [thread:$0]  %s17, 512, %s19, [#allocation3], 128, 128, 8
    $region5: #{tpu_custom_call.1} parent=1 // pred_fallthru
      _
    // Predicated region
    $region6: #{tpu_custom_call.1} parent=1 // pred_check
      _
    $region7: #{tpu_custom_call.1} parent=1 // pred_check_branch
      %26 = sbr.rel (0) target = $region9
    $region8: #{tpu_custom_call.1} parent=1 // pred_region
      _
    $region9: #{tpu_custom_call.1} parent=1 // pred_fallthru
      _
    // Predicated region
    $region10: #{tpu_custom_call.1} parent=1 // pred_check
      _
    $region11: #{tpu_custom_call.1} parent=1 // pred_check_branch
      %28 = sbr.rel (0) target = $region13
    $region12: #{tpu_custom_call.1} parent=1 // pred_region
      _
    $region13: #{tpu_custom_call.1} parent=1 // pred_fallthru
      _
    // Predicated region
    $region14: #{tpu_custom_call.1} parent=1 // pred_check
      _
    $region15: #{tpu_custom_call.1} parent=1 // pred_check_branch
      %30 = sbr.rel (0) target = $region17
    $region16: #{tpu_custom_call.1} parent=1 // pred_region
      _
    $region17: #{tpu_custom_call.1} parent=1 // pred_fallthru
      _
    // Predicated region
    $region18: #{tpu_custom_call.1} parent=1 // pred_check
      _
    $region19: #{tpu_custom_call.1} parent=1 // pred_check_branch
      %32 = sbr.rel (0) target = $region21
    $region20: #{tpu_custom_call.1} parent=1 // pred_region
      _
    $region21: #{tpu_custom_call.1} parent=1 // pred_fallthru
      _
    // Predicated region
    $region22: #{tpu_custom_call.1} parent=1 // pred_check
      _
    $region23: #{tpu_custom_call.1} parent=1 // pred_check_branch
      %34 = sbr.rel (0) target = $region25
    $region24: #{tpu_custom_call.1} parent=1 // pred_region
      %36 = dma.done [#allocation3], 512
    $region25: #{tpu_custom_call.1} parent=1 // pred_fallthru
      _
    %v37 = vld [vmem:[%s1] sm:$0xff]
    %v38 = vld [vmem:[%s1 + $0x8] sm:$0xff]
    %v39 = vld [vmem:[%s1 + $0x10] sm:$0xff]
    %v40 = vld [vmem:[%s1 + $0x18] sm:$0xff]
    %v41 = vld [vmem:[#allocation2] sm:$0xff]
    %v42 = vld [vmem:[#allocation2 + $0x8] sm:$0xff]
    %v43 = vld [vmem:[#allocation2 + $0x10] sm:$0xff]
    %v44 = vld [vmem:[#allocation2 + $0x18] sm:$0xff]
    %v45 = vld [vmem:[%s2] sm:$0xff]
    %v46 = vld [vmem:[%s2 + $0x8] sm:$0xff]
    %v47 = vld [vmem:[%s2 + $0x10] sm:$0xff]
    %v48 = vld [vmem:[%s2 + $0x18] sm:$0xff]
    %50 = vset.pattern.permute.xlu0 0
    %51 = vperm.xlu0 %50, %v45
    %v52 = vpop.permute.xlu0 %51
    %55 = vset.pattern.permute.xlu0 0
    %56 = vperm.xlu0 %55, %v46
    %v57 = vpop.permute.xlu0 %56
    %60 = vset.pattern.permute.xlu0 0
    %61 = vperm.xlu0 %60, %v47
    %v62 = vpop.permute.xlu0 %61
    %65 = vset.pattern.permute.xlu0 0
    %66 = vperm.xlu0 %65, %v48
    %v67 = vpop.permute.xlu0 %66
    %vm69 = vcmask 261120
    %v71 = vsel %vm69, %v37, 0
    %v74 = vsel %vm69, %v38, 0
    %v77 = vsel %vm69, %v39, 0
    %v80 = vsel %vm69, %v40, 0
    %82 = vmatpush.msra.mxu0 0.0
    %83 = vmatpush.msra.mxu0 0.0
    %84 = vmatpush.msra.mxu0 0.0
    %85 = vmatpush.msra.mxu0 0.0
    %86 = vmatpush.msra.mxu0 0.0
    %87 = vmatpush.msra.mxu0 0.0
    %88 = vmatpush.msra.mxu0 0.0
    %89 = vmatpush.msra.mxu0 0.0
    %90 = vmatpush.msra.mxu0 0.0
    %91 = vmatpush.msra.mxu0 0.0
    %92 = vmatpush.msra.mxu0 0.0
    %93 = vmatpush.msra.mxu0 0.0
    %94 = vmatpush.msra.mxu0 %v44
    %95 = vmatpush.msra.mxu0 %v43
    %96 = vmatpush.msra.mxu0 %v42
    %97 = vmatpush.msra.mxu0 %v41
    %98 = vmatmul.f32.gmra.mxu0 %v71
    %v99 = vpop.f32.mrf.mxu0
    %v100 = vadd.f32 %v52, %v99
    %101 = vmatmul.f32.gmra.mxu0 %v74
    %v102 = vpop.f32.mrf.mxu0
    %v103 = vadd.f32 %v57, %v102
    %104 = vmatmul.f32.gmra.mxu0 %v77
    %v105 = vpop.f32.mrf.mxu0
    %v106 = vadd.f32 %v62, %v105
    %107 = vmatmul.f32.gmra.mxu0 %v80
    %v108 = vpop.f32.mrf.mxu0
    %v109 = vadd.f32 %v67, %v108
    %110 = vdwg.mxu0
    %v111 = vmax.f32 %v100, 0.0
    %v112 = vmax.f32 %v103, 0.0
    %v113 = vmax.f32 %v106, 0.0
    %v114 = vmax.f32 %v109, 0.0
    %s115 = scalar_lea.vmem %s1, 32
    %v116 = vld [vmem:[%s115] sm:$0xff]
    %v117 = vld [vmem:[%s115 + $0x8] sm:$0xff]
    %v118 = vld [vmem:[%s115 + $0x10] sm:$0xff]
    %v119 = vld [vmem:[%s115 + $0x18] sm:$0xff]
    %s120 = scalar_lea.vmem %s2, 32
    %v121 = vld [vmem:[%s120] sm:$0xff]
    %v122 = vld [vmem:[%s120 + $0x8] sm:$0xff]
    %v123 = vld [vmem:[%s120 + $0x10] sm:$0xff]
    %v124 = vld [vmem:[%s120 + $0x18] sm:$0xff]
    %126 = vset.pattern.permute.xlu0 0
    %127 = vperm.xlu0 %126, %v121
    %v128 = vpop.permute.xlu0 %127
    %131 = vset.pattern.permute.xlu0 0
    %132 = vperm.xlu0 %131, %v122
    %v133 = vpop.permute.xlu0 %132
    %136 = vset.pattern.permute.xlu0 0
    %137 = vperm.xlu0 %136, %v123
    %v138 = vpop.permute.xlu0 %137
    %141 = vset.pattern.permute.xlu0 0
    %142 = vperm.xlu0 %141, %v124
    %v143 = vpop.permute.xlu0 %142
    %v146 = vsel %vm69, %v116, 0
    %v149 = vsel %vm69, %v117, 0
    %v152 = vsel %vm69, %v118, 0
    %v155 = vsel %vm69, %v119, 0
    %157 = vmatpush.msra.mxu0 0.0
    %158 = vmatpush.msra.mxu0 0.0
    %159 = vmatpush.msra.mxu0 0.0
    %160 = vmatpush.msra.mxu0 0.0
    %161 = vmatpush.msra.mxu0 0.0
    %162 = vmatpush.msra.mxu0 0.0
    %163 = vmatpush.msra.mxu0 0.0
    %164 = vmatpush.msra.mxu0 0.0
    %165 = vmatpush.msra.mxu0 0.0
    %166 = vmatpush.msra.mxu0 0.0
    %167 = vmatpush.msra.mxu0 0.0
    %168 = vmatpush.msra.mxu0 0.0
    %169 = vmatpush.msra.mxu0 %v114
    %170 = vmatpush.msra.mxu0 %v113
    %171 = vmatpush.msra.mxu0 %v112
    %172 = vmatpush.msra.mxu0 %v111
    %173 = vmatmul.f32.gmra.mxu0 %v146
    %v174 = vpop.f32.mrf.mxu0
    %v175 = vadd.f32 %v128, %v174
    %176 = vmatmul.f32.gmra.mxu0 %v149
    %v177 = vpop.f32.mrf.mxu0
    %v178 = vadd.f32 %v133, %v177
    %179 = vmatmul.f32.gmra.mxu0 %v152
    %v180 = vpop.f32.mrf.mxu0
    %v181 = vadd.f32 %v138, %v180
    %182 = vmatmul.f32.gmra.mxu0 %v155
    %v183 = vpop.f32.mrf.mxu0
    %v184 = vadd.f32 %v143, %v183
    %185 = vdwg.mxu0
    %v186 = vmax.f32 %v175, 0.0
    %v187 = vmax.f32 %v178, 0.0
    %v188 = vmax.f32 %v181, 0.0
    %v189 = vmax.f32 %v184, 0.0
    %s190 = scalar_lea.vmem %s1, 64
    %v191 = vld [vmem:[%s190] sm:$0xff]
    %v192 = vld [vmem:[%s190 + $0x8] sm:$0xff]
    %v193 = vld [vmem:[%s190 + $0x10] sm:$0xff]
    %v194 = vld [vmem:[%s190 + $0x18] sm:$0xff]
    %s195 = scalar_lea.vmem %s2, 64
    %v196 = vld [vmem:[%s195] sm:$0xff]
    %v197 = vld [vmem:[%s195 + $0x8] sm:$0xff]
    %v198 = vld [vmem:[%s195 + $0x10] sm:$0xff]
    %v199 = vld [vmem:[%s195 + $0x18] sm:$0xff]
    %201 = vset.pattern.permute.xlu0 0
    %202 = vperm.xlu0 %201, %v196
    %v203 = vpop.permute.xlu0 %202
    %206 = vset.pattern.permute.xlu0 0
    %207 = vperm.xlu0 %206, %v197
    %v208 = vpop.permute.xlu0 %207
    %211 = vset.pattern.permute.xlu0 0
    %212 = vperm.xlu0 %211, %v198
    %v213 = vpop.permute.xlu0 %212
    %216 = vset.pattern.permute.xlu0 0
    %217 = vperm.xlu0 %216, %v199
    %v218 = vpop.permute.xlu0 %217
    %v221 = vsel %vm69, %v191, 0
    %v224 = vsel %vm69, %v192, 0
    %v227 = vsel %vm69, %v193, 0
    %v230 = vsel %vm69, %v194, 0
    %232 = vmatpush.msra.mxu0 0.0
    %233 = vmatpush.msra.mxu0 0.0
    %234 = vmatpush.msra.mxu0 0.0
    %235 = vmatpush.msra.mxu0 0.0
    %236 = vmatpush.msra.mxu0 0.0
    %237 = vmatpush.msra.mxu0 0.0
    %238 = vmatpush.msra.mxu0 0.0
    %239 = vmatpush.msra.mxu0 0.0
    %240 = vmatpush.msra.mxu0 0.0
    %241 = vmatpush.msra.mxu0 0.0
    %242 = vmatpush.msra.mxu0 0.0
    %243 = vmatpush.msra.mxu0 0.0
    %244 = vmatpush.msra.mxu0 %v189
    %245 = vmatpush.msra.mxu0 %v188
    %246 = vmatpush.msra.mxu0 %v187
    %247 = vmatpush.msra.mxu0 %v186
    %248 = vmatmul.f32.gmra.mxu0 %v221
    %v249 = vpop.f32.mrf.mxu0
    %v250 = vadd.f32 %v203, %v249
    %251 = vmatmul.f32.gmra.mxu0 %v224
    %v252 = vpop.f32.mrf.mxu0
    %v253 = vadd.f32 %v208, %v252
    %254 = vmatmul.f32.gmra.mxu0 %v227
    %v255 = vpop.f32.mrf.mxu0
    %v256 = vadd.f32 %v213, %v255
    %257 = vmatmul.f32.gmra.mxu0 %v230
    %v258 = vpop.f32.mrf.mxu0
    %v259 = vadd.f32 %v218, %v258
    %260 = vdwg.mxu0
    %v261 = vmax.f32 %v250, 0.0
    %v262 = vmax.f32 %v253, 0.0
    %v263 = vmax.f32 %v256, 0.0
    %v264 = vmax.f32 %v259, 0.0
    %v265 = vld [vmem:[%s3] sm:$0xff]
    %v266 = vld [vmem:[%s3 + $0x8] sm:$0xff]
    %v267 = vld [vmem:[%s3 + $0x10] sm:$0xff]
    %v268 = vld [vmem:[%s3 + $0x18] sm:$0xff]
    %v269 = vld [vmem:[%s4] sm:$0xff]
    %v270 = vld [vmem:[%s4 + $0x8] sm:$0xff]
    %v271 = vld [vmem:[%s4 + $0x10] sm:$0xff]
    %v272 = vld [vmem:[%s4 + $0x18] sm:$0xff]
    %274 = vset.pattern.permute.xlu0 0
    %275 = vperm.xlu0 %274, %v269
    %v276 = vpop.permute.xlu0 %275
    %279 = vset.pattern.permute.xlu0 0
    %280 = vperm.xlu0 %279, %v270
    %v281 = vpop.permute.xlu0 %280
    %284 = vset.pattern.permute.xlu0 0
    %285 = vperm.xlu0 %284, %v271
    %v286 = vpop.permute.xlu0 %285
    %289 = vset.pattern.permute.xlu0 0
    %290 = vperm.xlu0 %289, %v272
    %v291 = vpop.permute.xlu0 %290
    %vm293 = vcmask 523264
    %v295 = vsel %vm293, %v265, 0
    %v298 = vsel %vm293, %v266, 0
    %v301 = vsel %vm293, %v267, 0
    %v304 = vsel %vm293, %v268, 0
    %306 = vmatpush.msra.mxu0 0.0
    %307 = vmatpush.msra.mxu0 0.0
    %308 = vmatpush.msra.mxu0 0.0
    %309 = vmatpush.msra.mxu0 0.0
    %310 = vmatpush.msra.mxu0 0.0
    %311 = vmatpush.msra.mxu0 0.0
    %312 = vmatpush.msra.mxu0 0.0
    %313 = vmatpush.msra.mxu0 0.0
    %314 = vmatpush.msra.mxu0 %v114
    %315 = vmatpush.msra.mxu0 %v113
    %316 = vmatpush.msra.mxu0 %v112
    %317 = vmatpush.msra.mxu0 %v111
    %318 = vmatpush.msra.mxu0 %v264
    %319 = vmatpush.msra.mxu0 %v263
    %320 = vmatpush.msra.mxu0 %v262
    %321 = vmatpush.msra.mxu0 %v261
    %322 = vmatmul.f32.gmra.mxu0 %v295
    %v323 = vpop.f32.mrf.mxu0
    %v324 = vadd.f32 %v276, %v323
    %325 = vmatmul.f32.gmra.mxu0 %v298
    %v326 = vpop.f32.mrf.mxu0
    %v327 = vadd.f32 %v281, %v326
    %328 = vmatmul.f32.gmra.mxu0 %v301
    %v329 = vpop.f32.mrf.mxu0
    %v330 = vadd.f32 %v286, %v329
    %331 = vmatmul.f32.gmra.mxu0 %v304
    %v332 = vpop.f32.mrf.mxu0
    %v333 = vadd.f32 %v291, %v332
    %334 = vdwg.mxu0
    %v335 = vmax.f32 %v324, 0.0
    %v336 = vmax.f32 %v327, 0.0
    %v337 = vmax.f32 %v330, 0.0
    %v338 = vmax.f32 %v333, 0.0
    %s339 = scalar_lea.vmem %s1, 96
    %v340 = vld [vmem:[%s339] sm:$0xff]
    %v341 = vld [vmem:[%s339 + $0x8] sm:$0xff]
    %v342 = vld [vmem:[%s339 + $0x10] sm:$0xff]
    %v343 = vld [vmem:[%s339 + $0x18] sm:$0xff]
    %s344 = scalar_lea.vmem %s2, 96
    %v345 = vld [vmem:[%s344] sm:$0xff]
    %v346 = vld [vmem:[%s344 + $0x8] sm:$0xff]
    %v347 = vld [vmem:[%s344 + $0x10] sm:$0xff]
    %v348 = vld [vmem:[%s344 + $0x18] sm:$0xff]
    %350 = vset.pattern.permute.xlu0 0
    %351 = vperm.xlu0 %350, %v345
    %v352 = vpop.permute.xlu0 %351
    %355 = vset.pattern.permute.xlu0 0
    %356 = vperm.xlu0 %355, %v346
    %v357 = vpop.permute.xlu0 %356
    %360 = vset.pattern.permute.xlu0 0
    %361 = vperm.xlu0 %360, %v347
    %v362 = vpop.permute.xlu0 %361
    %365 = vset.pattern.permute.xlu0 0
    %366 = vperm.xlu0 %365, %v348
    %v367 = vpop.permute.xlu0 %366
    %v370 = vsel %vm69, %v340, 0
    %v373 = vsel %vm69, %v341, 0
    %v376 = vsel %vm69, %v342, 0
    %v379 = vsel %vm69, %v343, 0
    %381 = vmatpush.msra.mxu0 0.0
    %382 = vmatpush.msra.mxu0 0.0
    %383 = vmatpush.msra.mxu0 0.0
    %384 = vmatpush.msra.mxu0 0.0
    %385 = vmatpush.msra.mxu0 0.0
    %386 = vmatpush.msra.mxu0 0.0
    %387 = vmatpush.msra.mxu0 0.0
    %388 = vmatpush.msra.mxu0 0.0
    %389 = vmatpush.msra.mxu0 0.0
    %390 = vmatpush.msra.mxu0 0.0
    %391 = vmatpush.msra.mxu0 0.0
    %392 = vmatpush.msra.mxu0 0.0
    %393 = vmatpush.msra.mxu0 %v338
    %394 = vmatpush.msra.mxu0 %v337
    %395 = vmatpush.msra.mxu0 %v336
    %396 = vmatpush.msra.mxu0 %v335
    %397 = vmatmul.f32.gmra.mxu0 %v370
    %v398 = vpop.f32.mrf.mxu0
    %v399 = vadd.f32 %v352, %v398
    %400 = vmatmul.f32.gmra.mxu0 %v373
    %v401 = vpop.f32.mrf.mxu0
    %v402 = vadd.f32 %v357, %v401
    %403 = vmatmul.f32.gmra.mxu0 %v376
    %v404 = vpop.f32.mrf.mxu0
    %v405 = vadd.f32 %v362, %v404
    %406 = vmatmul.f32.gmra.mxu0 %v379
    %v407 = vpop.f32.mrf.mxu0
    %v408 = vadd.f32 %v367, %v407
    %409 = vdwg.mxu0
    %v410 = vmax.f32 %v399, 0.0
    %v411 = vmax.f32 %v402, 0.0
    %v412 = vmax.f32 %v405, 0.0
    %v413 = vmax.f32 %v408, 0.0
    %s414 = scalar_lea.vmem %s1, 128
    %v415 = vld [vmem:[%s414] sm:$0xff]
    %v416 = vld [vmem:[%s414 + $0x8] sm:$0xff]
    %v417 = vld [vmem:[%s414 + $0x10] sm:$0xff]
    %v418 = vld [vmem:[%s414 + $0x18] sm:$0xff]
    %s419 = scalar_lea.vmem %s2, 128
    %v420 = vld [vmem:[%s419] sm:$0xff]
    %v421 = vld [vmem:[%s419 + $0x8] sm:$0xff]
    %v422 = vld [vmem:[%s419 + $0x10] sm:$0xff]
    %v423 = vld [vmem:[%s419 + $0x18] sm:$0xff]
    %425 = vset.pattern.permute.xlu0 0
    %426 = vperm.xlu0 %425, %v420
    %v427 = vpop.permute.xlu0 %426
    %430 = vset.pattern.permute.xlu0 0
    %431 = vperm.xlu0 %430, %v421
    %v432 = vpop.permute.xlu0 %431
    %435 = vset.pattern.permute.xlu0 0
    %436 = vperm.xlu0 %435, %v422
    %v437 = vpop.permute.xlu0 %436
    %440 = vset.pattern.permute.xlu0 0
    %441 = vperm.xlu0 %440, %v423
    %v442 = vpop.permute.xlu0 %441
    %v445 = vsel %vm69, %v415, 0
    %v448 = vsel %vm69, %v416, 0
    %v451 = vsel %vm69, %v417, 0
    %v454 = vsel %vm69, %v418, 0
    %456 = vmatpush.msra.mxu0 0.0
    %457 = vmatpush.msra.mxu0 0.0
    %458 = vmatpush.msra.mxu0 0.0
    %459 = vmatpush.msra.mxu0 0.0
    %460 = vmatpush.msra.mxu0 0.0
    %461 = vmatpush.msra.mxu0 0.0
    %462 = vmatpush.msra.mxu0 0.0
    %463 = vmatpush.msra.mxu0 0.0
    %464 = vmatpush.msra.mxu0 0.0
    %465 = vmatpush.msra.mxu0 0.0
    %466 = vmatpush.msra.mxu0 0.0
    %467 = vmatpush.msra.mxu0 0.0
    %468 = vmatpush.msra.mxu0 %v413
    %469 = vmatpush.msra.mxu0 %v412
    %470 = vmatpush.msra.mxu0 %v411
    %471 = vmatpush.msra.mxu0 %v410
    %472 = vmatmul.f32.gmra.mxu0 %v445
    %v473 = vpop.f32.mrf.mxu0
    %v474 = vadd.f32 %v427, %v473
    %475 = vmatmul.f32.gmra.mxu0 %v448
    %v476 = vpop.f32.mrf.mxu0
    %v477 = vadd.f32 %v432, %v476
    %478 = vmatmul.f32.gmra.mxu0 %v451
    %v479 = vpop.f32.mrf.mxu0
    %v480 = vadd.f32 %v437, %v479
    %481 = vmatmul.f32.gmra.mxu0 %v454
    %v482 = vpop.f32.mrf.mxu0
    %v483 = vadd.f32 %v442, %v482
    %484 = vdwg.mxu0
    %v485 = vmax.f32 %v474, 0.0
    %v486 = vmax.f32 %v477, 0.0
    %v487 = vmax.f32 %v480, 0.0
    %v488 = vmax.f32 %v483, 0.0
    %s489 = scalar_lea.vmem %s3, 32
    %v490 = vld [vmem:[%s489] sm:$0xff]
    %v491 = vld [vmem:[%s489 + $0x8] sm:$0xff]
    %v492 = vld [vmem:[%s489 + $0x10] sm:$0xff]
    %v493 = vld [vmem:[%s489 + $0x18] sm:$0xff]
    %s494 = scalar_lea.vmem %s4, 32
    %v495 = vld [vmem:[%s494] sm:$0xff]
    %v496 = vld [vmem:[%s494 + $0x8] sm:$0xff]
    %v497 = vld [vmem:[%s494 + $0x10] sm:$0xff]
    %v498 = vld [vmem:[%s494 + $0x18] sm:$0xff]
    %500 = vset.pattern.permute.xlu0 0
    %501 = vperm.xlu0 %500, %v495
    %v502 = vpop.permute.xlu0 %501
    %505 = vset.pattern.permute.xlu0 0
    %506 = vperm.xlu0 %505, %v496
    %v507 = vpop.permute.xlu0 %506
    %510 = vset.pattern.permute.xlu0 0
    %511 = vperm.xlu0 %510, %v497
    %v512 = vpop.permute.xlu0 %511
    %515 = vset.pattern.permute.xlu0 0
    %516 = vperm.xlu0 %515, %v498
    %v517 = vpop.permute.xlu0 %516
    %v520 = vsel %vm293, %v490, 0
    %v523 = vsel %vm293, %v491, 0
    %v526 = vsel %vm293, %v492, 0
    %v529 = vsel %vm293, %v493, 0
    %531 = vmatpush.msra.mxu0 0.0
    %532 = vmatpush.msra.mxu0 0.0
    %533 = vmatpush.msra.mxu0 0.0
    %534 = vmatpush.msra.mxu0 0.0
    %535 = vmatpush.msra.mxu0 0.0
    %536 = vmatpush.msra.mxu0 0.0
    %537 = vmatpush.msra.mxu0 0.0
    %538 = vmatpush.msra.mxu0 0.0
    %539 = vmatpush.msra.mxu0 %v338
    %540 = vmatpush.msra.mxu0 %v337
    %541 = vmatpush.msra.mxu0 %v336
    %542 = vmatpush.msra.mxu0 %v335
    %543 = vmatpush.msra.mxu0 %v488
    %544 = vmatpush.msra.mxu0 %v487
    %545 = vmatpush.msra.mxu0 %v486
    %546 = vmatpush.msra.mxu0 %v485
    %547 = vmatmul.f32.gmra.mxu0 %v520
    %v548 = vpop.f32.mrf.mxu0
    %v549 = vadd.f32 %v502, %v548
    %550 = vmatmul.f32.gmra.mxu0 %v523
    %v551 = vpop.f32.mrf.mxu0
    %v552 = vadd.f32 %v507, %v551
    %553 = vmatmul.f32.gmra.mxu0 %v526
    %v554 = vpop.f32.mrf.mxu0
    %v555 = vadd.f32 %v512, %v554
    %556 = vmatmul.f32.gmra.mxu0 %v529
    %v557 = vpop.f32.mrf.mxu0
    %v558 = vadd.f32 %v517, %v557
    %559 = vdwg.mxu0
    %v560 = vmax.f32 %v549, 0.0
    %v561 = vmax.f32 %v552, 0.0
    %v562 = vmax.f32 %v555, 0.0
    %v563 = vmax.f32 %v558, 0.0
    %s564 = scalar_lea.vmem %s1, 160
    %v565 = vld [vmem:[%s564] sm:$0xff]
    %v566 = vld [vmem:[%s564 + $0x8] sm:$0xff]
    %v567 = vld [vmem:[%s564 + $0x10] sm:$0xff]
    %v568 = vld [vmem:[%s564 + $0x18] sm:$0xff]
    %s569 = scalar_lea.vmem %s2, 160
    %v570 = vld [vmem:[%s569] sm:$0xff]
    %v571 = vld [vmem:[%s569 + $0x8] sm:$0xff]
    %v572 = vld [vmem:[%s569 + $0x10] sm:$0xff]
    %v573 = vld [vmem:[%s569 + $0x18] sm:$0xff]
    %575 = vset.pattern.permute.xlu0 0
    %576 = vperm.xlu0 %575, %v570
    %v577 = vpop.permute.xlu0 %576
    %580 = vset.pattern.permute.xlu0 0
    %581 = vperm.xlu0 %580, %v571
    %v582 = vpop.permute.xlu0 %581
    %585 = vset.pattern.permute.xlu0 0
    %586 = vperm.xlu0 %585, %v572
    %v587 = vpop.permute.xlu0 %586
    %590 = vset.pattern.permute.xlu0 0
    %591 = vperm.xlu0 %590, %v573
    %v592 = vpop.permute.xlu0 %591
    %v595 = vsel %vm69, %v565, 0
    %v598 = vsel %vm69, %v566, 0
    %v601 = vsel %vm69, %v567, 0
    %v604 = vsel %vm69, %v568, 0
    %606 = vmatpush.msra.mxu0 0.0
    %607 = vmatpush.msra.mxu0 0.0
    %608 = vmatpush.msra.mxu0 0.0
    %609 = vmatpush.msra.mxu0 0.0
    %610 = vmatpush.msra.mxu0 0.0
    %611 = vmatpush.msra.mxu0 0.0
    %612 = vmatpush.msra.mxu0 0.0
    %613 = vmatpush.msra.mxu0 0.0
    %614 = vmatpush.msra.mxu0 0.0
    %615 = vmatpush.msra.mxu0 0.0
    %616 = vmatpush.msra.mxu0 0.0
    %617 = vmatpush.msra.mxu0 0.0
    %618 = vmatpush.msra.mxu0 %v563
    %619 = vmatpush.msra.mxu0 %v562
    %620 = vmatpush.msra.mxu0 %v561
    %621 = vmatpush.msra.mxu0 %v560
    %622 = vmatmul.f32.gmra.mxu0 %v595
    %v623 = vpop.f32.mrf.mxu0
    %v624 = vadd.f32 %v577, %v623
    %625 = vmatmul.f32.gmra.mxu0 %v598
    %v626 = vpop.f32.mrf.mxu0
    %v627 = vadd.f32 %v582, %v626
    %628 = vmatmul.f32.gmra.mxu0 %v601
    %v629 = vpop.f32.mrf.mxu0
    %v630 = vadd.f32 %v587, %v629
    %631 = vmatmul.f32.gmra.mxu0 %v604
    %v632 = vpop.f32.mrf.mxu0
    %v633 = vadd.f32 %v592, %v632
    %634 = vdwg.mxu0
    %v635 = vxor.u32 %v624, 2147483648
    %v636 = vxor.u32 %v627, 2147483648
    %v637 = vxor.u32 %v630, 2147483648
    %v638 = vxor.u32 %v633, 2147483648
    %v639 = vmul.f32 %v635, 1.442695
    %v640 = vpow.pop %v639
    %v641 = vmul.f32 %v636, 1.442695
    %v642 = vpow.pop %v641
    %v643 = vmul.f32 %v637, 1.442695
    %v644 = vpow.pop %v643
    %v645 = vmul.f32 %v638, 1.442695
    %v646 = vpow.pop %v645
    %v647 = vadd.f32 %v640, 1.0
    %v648 = vadd.f32 %v642, 1.0
    %v649 = vadd.f32 %v644, 1.0
    %v650 = vadd.f32 %v646, 1.0
    %v651 = vrcp.pop %v647
    %v652 = vmul.f32 %v647, %v651
    %v653 = vsub.f32 1.0, %v652
    %v654 = vmul.f32 %v651, %v653
    %v655 = vadd.f32 %v651, %v654
    %vm656 = vweird.f32 %v647
    %vm657 = vweird.f32 %v651
    %vm658 = vmor %vm656, %vm657
    %v659 = vsel %vm658, %v651, %v655
    %v660 = vand.u32 2147483647, %v647
    %vm661 = vcmp.eq.f32.partialorder %v660, 8.507059e+37
    %v662 = vand.u32 %v647, 2147483648
    %v663 = vor.u32 1.1754944e-38, %v662
    %v664 = vsel %vm661, %v663, %v659
    %v665 = vmul.f32 1.0, %v664
    %v666 = vrcp.pop %v648
    %v667 = vmul.f32 %v648, %v666
    %v668 = vsub.f32 1.0, %v667
    %v669 = vmul.f32 %v666, %v668
    %v670 = vadd.f32 %v666, %v669
    %vm671 = vweird.f32 %v648
    %vm672 = vweird.f32 %v666
    %vm673 = vmor %vm671, %vm672
    %v674 = vsel %vm673, %v666, %v670
    %v675 = vand.u32 2147483647, %v648
    %vm676 = vcmp.eq.f32.partialorder %v675, 8.507059e+37
    %v677 = vand.u32 %v648, 2147483648
    %v678 = vor.u32 1.1754944e-38, %v677
    %v679 = vsel %vm676, %v678, %v674
    %v680 = vmul.f32 1.0, %v679
    %v681 = vrcp.pop %v649
    %v682 = vmul.f32 %v649, %v681
    %v683 = vsub.f32 1.0, %v682
    %v684 = vmul.f32 %v681, %v683
    %v685 = vadd.f32 %v681, %v684
    %vm686 = vweird.f32 %v649
    %vm687 = vweird.f32 %v681
    %vm688 = vmor %vm686, %vm687
    %v689 = vsel %vm688, %v681, %v685
    %v690 = vand.u32 2147483647, %v649
    %vm691 = vcmp.eq.f32.partialorder %v690, 8.507059e+37
    %v692 = vand.u32 %v649, 2147483648
    %v693 = vor.u32 1.1754944e-38, %v692
    %v694 = vsel %vm691, %v693, %v689
    %v695 = vmul.f32 1.0, %v694
    %v696 = vrcp.pop %v650
    %v697 = vmul.f32 %v650, %v696
    %v698 = vsub.f32 1.0, %v697
    %v699 = vmul.f32 %v696, %v698
    %v700 = vadd.f32 %v696, %v699
    %vm701 = vweird.f32 %v650
    %vm702 = vweird.f32 %v696
    %vm703 = vmor %vm701, %vm702
    %v704 = vsel %vm703, %v696, %v700
    %v705 = vand.u32 2147483647, %v650
    %vm706 = vcmp.eq.f32.partialorder %v705, 8.507059e+37
    %v707 = vand.u32 %v650, 2147483648
    %v708 = vor.u32 1.1754944e-38, %v707
    %v709 = vsel %vm706, %v708, %v704
    %v710 = vmul.f32 1.0, %v709
    %711 = vst [vmem:[#allocation5] sm:$0xff] %v665
    %712 = vst [vmem:[#allocation5 + $0x8] sm:$0xff] %v680
    %713 = vst [vmem:[#allocation5 + $0x10] sm:$0xff] %v695
    %714 = vst [vmem:[#allocation5 + $0x18] sm:$0xff] %v710
    // Predicated region
    $region26: #{tpu_custom_call.1} parent=1 // pred_check
      _
    $region27: #{tpu_custom_call.1} parent=1 // pred_check_branch
      %716 = sbr.rel (0) target = $region29
    $region28: #{tpu_custom_call.1} parent=1 // pred_region
      %718 = vsyncadd [#allocation4], 0
      %s719 = sshll.u32 [#allocation5], 4
      %s720 = int_to_ptr.vmem [resolvable:$true] %s719
      %s721 = sshll.u32 %s5, 4
      %s722 = int_to_ptr.hbm [resolvable:$true] %s721
      %727 = dma.vmem_to_hbm [thread:$0]  %s720, 512, %s722, [#allocation4], 128, 128, 8
    $region29: #{tpu_custom_call.1} parent=1 // pred_fallthru
      _
    // Predicated region
    $region30: #{tpu_custom_call.1} parent=1 // pred_check
      _
    $region31: #{tpu_custom_call.1} parent=1 // pred_check_branch
      %729 = sbr.rel (0) target = $region33
    $region32: #{tpu_custom_call.1} parent=1 // pred_region
      %731 = dma.done [#allocation4], 512
    $region33: #{tpu_custom_call.1} parent=1 // pred_fallthru
      _
    %732 = vsyncpa [#allocation3], 1
    %733 = vsyncpa [#allocation4], 1

</llo_original>
